<compile_context>
chip_gen: v5e
topology: v5e:2x2
jax: 0.10.0
libtpu: 0.0.40
codegen_flags: <defaults>
</compile_context>

<pallas_src>
import numpy as np
import jax
import jax.numpy as jnp
from jax.experimental import pallas as pl
from jax.experimental.pallas import tpu as pltpu


# ---------------------------------------------------------------------------
# Schedule setup (mirrors register_schedule with beta_schedule='linear')
# ---------------------------------------------------------------------------
def make_linear_beta_schedule(timesteps=1000, linear_start=1e-4, linear_end=2e-2):
    betas = (
        np.linspace(linear_start ** 0.5, linear_end ** 0.5, timesteps, dtype=np.float64)
        ** 2
    )
    return betas


def register_schedule(timesteps=1000, linear_start=1e-4, linear_end=2e-2):
    betas = make_linear_beta_schedule(timesteps, linear_start, linear_end)
    alphas = 1.0 - betas
    alphas_cumprod = np.cumprod(alphas, axis=0)
    alphas_cumprod_prev = np.append(1.0, alphas_cumprod[:-1])
    buffers = {
        "betas": betas,
        "alphas_cumprod": alphas_cumprod,
        "alphas_cumprod_prev": alphas_cumprod_prev,
        "sqrt_alphas_cumprod": np.sqrt(alphas_cumprod),
        "sqrt_one_minus_alphas_cumprod": np.sqrt(1.0 - alphas_cumprod),
        "log_one_minus_alphas_cumprod": np.log(1.0 - alphas_cumprod),
        "sqrt_recip_alphas_cumprod": np.sqrt(1.0 / alphas_cumprod),
        "sqrt_recipm1_alphas_cumprod": np.sqrt(1.0 / alphas_cumprod - 1.0),
    }
    return {k: jnp.asarray(v, dtype=jnp.float32) for k, v in buffers.items()}


# ---------------------------------------------------------------------------
# Pallas kernel: out[b] = a[b] * x[b] + c[b] * noise[b]
#   a_ref / c_ref : (B,) float32 in SMEM (scalar splat per grid step)
#   x_ref / n_ref / o_ref : (1, r_tile, 128) VMEM payload blocks
# ---------------------------------------------------------------------------
def _q_sample_kernel(a_ref, c_ref, x_ref, n_ref, o_ref):
    b = pl.program_id(0)
    a = a_ref[b]
    c = c_ref[b]
    o_ref[...] = (a * x_ref[...] + c * n_ref[...]).astype(o_ref.dtype)


def _pick_r_tile(R, B, max_rows=2048):
    """Sublane rows per payload block.

    Multiple of 8 (or == R when R < 8), capped at max_rows (1 MiB f32 per
    streamed input), and shrunk until the grid has >= 4 steps when the payload
    is large enough to benefit from pipelining.
    """
    if R <= 8:
        return R
    r_tile = min((R // 8) * 8, max_rows)

    def steps(rt):
        return B * ((R + rt - 1) // rt)

    while steps(r_tile) < 4 and r_tile > 8:
        r_tile = max(8, (r_tile // 2) // 8 * 8)
    return r_tile


# ---------------------------------------------------------------------------
# Wrapper
# ---------------------------------------------------------------------------
class AbstractLowScaleModelPallas:
    def __init__(self, timesteps=1000, linear_start=1e-4, linear_end=2e-2):
        self.num_timesteps = timesteps
        self.buffers = register_schedule(timesteps, linear_start, linear_end)

    def forward(self, x):
        # forward(x) = (x, None): pure identity -> no kernel, no HBM round trip.
        return x, None

    def decode(self, x):
        return x

    def q_sample(self, x_start, t, noise):
        # x_start, noise: (B, C, H, W); t: (B,) int32
        B, C, H, W = x_start.shape
        L = C * H * W
        dtype = x_start.dtype

        # Per-batch coefficients gathered once in the wrapper; kept f32 for SMEM.
        coef_a = self.buffers["sqrt_alphas_cumprod"][t].astype(jnp.float32)
        coef_c = self.buffers["sqrt_one_minus_alphas_cumprod"][t].astype(jnp.float32)

        # Flatten payload (free reshape for contiguous row-major arrays).
        xf = x_start.reshape(B, L)
        nf = noise.reshape(B, L)
        if L % 128 != 0:
            # TODO(synk): handle ragged tails in-kernel (masked store) instead of
            # padding; real SD latents have C*H*W % 128 == 0 so this path is cold.
            pad = 128 - (L % 128)
            xf = jnp.pad(xf, ((0, 0), (0, pad)))
            nf = jnp.pad(nf, ((0, 0), (0, pad)))
        Lp = xf.shape[1]
        R = Lp // 128
        x3 = xf.reshape(B, R, 128)   # lane-dense (sublanes=R, lanes=128) view
        n3 = nf.reshape(B, R, 128)

        r_tile = _pick_r_tile(R, B)
        n_r = pl.cdiv(R, r_tile)

        payload_spec = pl.BlockSpec((1, r_tile, 128), lambda b, r: (b, r, 0))
        smem_spec = pl.BlockSpec(memory_space=pltpu.MemorySpace.SMEM)

        itemsize = x3.dtype.itemsize
        out3 = pl.pallas_call(
            _q_sample_kernel,
            out_shape=jax.ShapeDtypeStruct((B, R, 128), dtype),
            grid=(B, n_r),
            in_specs=[smem_spec, smem_spec, payload_spec, payload_spec],
            out_specs=payload_spec,
            compiler_params=pltpu.CompilerParams(
                dimension_semantics=("parallel", "parallel"),
                vmem_limit_bytes=32 * 1024 * 1024,
            ),
            cost_estimate=pl.CostEstimate(
                flops=3 * B * Lp,
                transcendentals=0,
                bytes_accessed=3 * B * Lp * itemsize + 2 * B * 4,
            ),
        )(coef_a, coef_c, x3, n3)

        out = out3.reshape(B, Lp)
        if Lp != L:
            out = out[:, :L]
        return out.reshape(B, C, H, W)


# ---------------------------------------------------------------------------
# Main
# ---------------------------------------------------------------------------
if __name__ == "__main__":
    key = jax.random.PRNGKey(0)
    kx, kn, kt = jax.random.split(key, 3)

    B, C, H, W = 2, 4, 16, 16
    x = jax.random.normal(kx, (B, C, H, W), dtype=jnp.float32)
    noise = jax.random.normal(kn, (B, C, H, W), dtype=jnp.float32)
    t = jax.random.randint(kt, (B,), 0, 1000, dtype=jnp.int32)

    model = AbstractLowScaleModelPallas()

    # forward: (x, None) — identity, no kernel.
    y, none_out = model.forward(x)
    y = jax.block_until_ready(y)
    assert none_out is None
    np.testing.assert_allclose(np.asarray(y), np.asarray(x), rtol=0, atol=0)

    # q_sample hot path (Pallas kernel)
    q = jax.block_until_ready(model.q_sample(x, t, noise))

    # pure-JAX reference
    ca = model.buffers["sqrt_alphas_cumprod"][t].reshape(B, 1, 1, 1)
    cb = model.buffers["sqrt_one_minus_alphas_cumprod"][t].reshape(B, 1, 1, 1)
    ref = ca * x + cb * noise
    np.testing.assert_allclose(np.asarray(q), np.asarray(ref), rtol=1e-6, atol=1e-6)

    # decode is identity
    d = model.decode(x)
    assert d.shape == x.shape

    print("KERNEL_OK")
</pallas_src>

<mosaic_0001>
module attributes {stable_mosaic.version = 11 : i64} {
  func.func @_q_sample_kernel(%arg0: i32, %arg1: i32, %arg2: memref<2xf32, #tpu.memory_space<smem>>, %arg3: memref<2xf32, #tpu.memory_space<smem>>, %arg4: memref<1x8x128xf32, #tpu.memory_space<vmem>>, %arg5: memref<1x8x128xf32, #tpu.memory_space<vmem>>, %arg6: memref<1x8x128xf32, #tpu.memory_space<vmem>>) attributes {dimension_semantics = [#tpu.dimension_semantics<parallel>, #tpu.dimension_semantics<parallel>], iteration_bounds = array<i64: 2, 1>, scalar_prefetch = 0 : i64, scratch_operands = 0 : i64, tpu.core_type = #tpu.core_type<tc>, window_params = [{transform_indices = @transform_0, window_bounds = array<i64: 2>}, {transform_indices = @transform_1, window_bounds = array<i64: 2>}, {transform_indices = @transform_2, window_bounds = array<i64: 1, 8, 128>}, {transform_indices = @transform_3, window_bounds = array<i64: 1, 8, 128>}, {transform_indices = @transform_4, window_bounds = array<i64: 1, 8, 128>}]} {
    %0 = arith.index_cast %arg0 : i32 to index
    %1 = memref.load %arg2[%0] : memref<2xf32, #tpu.memory_space<smem>>
    %2 = arith.index_cast %arg0 : i32 to index
    %3 = memref.load %arg3[%2] : memref<2xf32, #tpu.memory_space<smem>>
    %c0 = arith.constant 0 : index
    %c0_0 = arith.constant 0 : index
    %c0_1 = arith.constant 0 : index
    %4 = vector.load %arg4[%c0, %c0_0, %c0_1] : memref<1x8x128xf32, #tpu.memory_space<vmem>>, vector<1x8x128xf32>
    %5 = vector.broadcast %1 : f32 to vector<1x8x128xf32>
    %6 = arith.mulf %5, %4 : vector<1x8x128xf32>
    %c0_2 = arith.constant 0 : index
    %c0_3 = arith.constant 0 : index
    %c0_4 = arith.constant 0 : index
    %7 = vector.load %arg5[%c0_2, %c0_3, %c0_4] : memref<1x8x128xf32, #tpu.memory_space<vmem>>, vector<1x8x128xf32>
    %8 = vector.broadcast %3 : f32 to vector<1x8x128xf32>
    %9 = arith.mulf %8, %7 : vector<1x8x128xf32>
    %10 = arith.addf %6, %9 : vector<1x8x128xf32>
    %c0_5 = arith.constant 0 : index
    %c0_6 = arith.constant 0 : index
    %c0_7 = arith.constant 0 : index
    %11 = vector.load %arg6[%c0_5, %c0_6, %c0_7] : memref<1x8x128xf32, #tpu.memory_space<vmem>>, vector<1x8x128xf32>
    tpu.vector_store %arg6[%c0_5, %c0_6, %c0_7], %10 {strides = array<i32>} : memref<1x8x128xf32, #tpu.memory_space<vmem>>, vector<1x8x128xf32>,
    return
  }
  func.func @transform_0(%arg0: i32, %arg1: i32) -> i32 {
    %c0_i32 = arith.constant 0 : i32
    %c0_i32_0 = arith.constant 0 : i32
    return %c0_i32 : i32
  }
  func.func @transform_1(%arg0: i32, %arg1: i32) -> i32 {
    %c0_i32 = arith.constant 0 : i32
    %c0_i32_0 = arith.constant 0 : i32
    return %c0_i32 : i32
  }
  func.func @transform_2(%arg0: i32, %arg1: i32) -> (i32, i32, i32) {
    %c0_i32 = arith.constant 0 : i32
    %c0_i32_0 = arith.constant 0 : i32
    return %arg0, %arg1, %c0_i32 : i32, i32, i32
  }
  func.func @transform_3(%arg0: i32, %arg1: i32) -> (i32, i32, i32) {
    %c0_i32 = arith.constant 0 : i32
    %c0_i32_0 = arith.constant 0 : i32
    return %arg0, %arg1, %c0_i32 : i32, i32, i32
  }
  func.func @transform_4(%arg0: i32, %arg1: i32) -> (i32, i32, i32) {
    %c0_i32 = arith.constant 0 : i32
    %c0_i32_0 = arith.constant 0 : i32
    return %arg0, %arg1, %c0_i32 : i32, i32, i32
  }
}

</mosaic_0001>

<llo_original>
// kernel: tpu_custom_call.1
$region0: #{tpu_custom_call.1}
  #allocation0 [shape = 'u32[]', space=smem, size = 0x4, offset = 0x4, fixed_abs, tag = 'smem constant byte address 0x4 - core index']
  #allocation1 [shape = 'u32[72,128]{1,0:T(1,128)}', space=vmem, size = 0x9000, scoped, tag = 'internal scratch']
  %s0 = inlined_call_operand.hbm [shape: f32[2], index: 0, kind: input, shape index: {}]
  %s1 = inlined_call_operand.hbm [shape: f32[2], index: 1, kind: input, shape index: {}]
  %s2 = inlined_call_operand.hbm [shape: f32[2,8,128], index: 2, kind: input, shape index: {}]
  %s3 = inlined_call_operand.hbm [shape: f32[2,8,128], index: 3, kind: input, shape index: {}]
  %s4 = inlined_call_operand.hbm [shape: f32[2,8,128], index: 4, kind: output, shape index: {}]
  %s5 = sld [smem:[#allocation0]]
  $region65: #{tpu_custom_call.1} parent=0
    _
  %s7 = ssub.s32 1, %s5
  %s8 = scalar_select 0, %s7, %s5
  $region1: #{tpu_custom_call.1} parent=0
    #allocation2 [shape = 'u8[512]{0}', space=smem, size = 0x200, scoped, tag = 'input window, operand 0, single buffered']
    #allocation3 [shape = 's32[2]{0}', space=sflag, size = 0x8, scoped, tag = 'scoped memory for tpu_custom_call.1']
    #allocation4 [shape = 's32[2]{0}', space=sflag, size = 0x8, scoped, tag = 'scoped memory for tpu_custom_call.1']
    #allocation5 [shape = 's32[2]{0}', space=sflag, size = 0x8, scoped, tag = 'scoped memory for tpu_custom_call.1']
    #allocation6 [shape = 'u8[512]{0}', space=smem, size = 0x200, scoped, tag = 'input window, operand 1, single buffered']
    #allocation7 [shape = 's32[1]{0}', space=sflag, size = 0x4, scoped, tag = 'scoped memory for tpu_custom_call.1']
    #allocation8 [shape = 'u8[8192]{0}', space=vmem, size = 0x2000, scoped, tag = 'input window, operand 2']
    #allocation9 [shape = 'u8[8192]{0}', space=vmem, size = 0x2000, scoped, tag = 'input window, operand 3']
    #allocation10 [shape = 's32[2]{0}', space=sflag, size = 0x8, scoped, tag = 'scoped memory for tpu_custom_call.1']
    #allocation11 [shape = 'u8[8192]{0}', space=vmem, size = 0x2000, scoped, tag = 'output window, operand 0']
    %9 = vsyncpa [#allocation5], 0
    %10 = vsyncpa [#allocation7], 0
    %11 = vsyncpa [#allocation3], 0
    %s12 = scalar_lea.sflag [#allocation3], 1
    %13 = vsyncpa %s12, 0
    %14 = vsyncpa [#allocation10], 0
    %s15 = scalar_lea.sflag [#allocation10], 1
    %16 = vsyncpa %s15, 0
    %17 = vsyncpa [#allocation4], 0
    %s18 = scalar_lea.sflag [#allocation4], 1
    %19 = vsyncpa %s18, 0
    loop: start=0, step=1, limit=4
    $region2: #{tpu_custom_call.1} parent=1 // loop_pre_header
      _
    $region3: #{tpu_custom_call.1} parent=1 // loop_header
      %s21 = sphi 0, %s25
      %p22 = scmp.ge.s32.totalorder %s21, 4
      %s28 = sphi 0, %s40
      %s29 = sphi 0, %s36
      %s30 = sphi 0, %s28
      %s31 = sphi 0, %s29
      %s32 = sphi 0, %s30
      %s33 = sphi 0, %s31
      %s41 = sphi 0, %s41
      %s43 = sphi 0, %s41
      %s44 = sphi 0, %s43
      %s58 = sphi 0, %s44
      %s62 = sphi 0, %s62
      %s64 = sphi 0, %s62
      %s65 = sphi 0, %s64
      %s79 = sphi 0, %s65
      %s87 = sphi 0, %s89
      %s90 = sphi 0, %s87
      %s91 = sphi 0, %s90
      %s107 = sphi 0, %s91
      %s115 = sphi 0, %s117
      %s118 = sphi 0, %s115
      %s119 = sphi 0, %s118
      %s135 = sphi 0, %s119
      %s143 = sphi 0, %s145
      %s146 = sphi 0, %s143
      %s147 = sphi 0, %s146
      %s163 = sphi 0, %s147
    $region4: #{tpu_custom_call.1} parent=1 // loop_header_branch
      %24 = sbr.rel (%p22) target = $region8
    $region5: #{tpu_custom_call.1} parent=1 // loop_body
      %s26 = ssub.s32 %s21, 1
      %s27 = ssub.s32 %s21, 2
      %s34 = sadd.s32 1, %s29
      %p35 = scmp.ge.s32.totalorder %s34, 1
      %s36 = scalar_select %p35, 0, %s34
      %s37 = sadd.s32 1, %s28
      %s38 = scalar_select %p35, %s37, %s28
      %p39 = scmp.ge.s32.totalorder %s38, 2
      %s40 = scalar_select %p39, 0, %s38
      %s42 = sadd.s32 %s41, 1
      %p45 = scmp.eq.s32.totalorder %s21, 1
      %p46 = scmp.ne.s32.totalorder %s41, %s43
      %p47 = scmp.eq.s32.totalorder %s21, 0
      %p48 = por %p46, %p47
      %p49 = scmp.ne.s32.totalorder %s41, %s43
      %p50 = scmp.eq.s32.totalorder %s26, 1
      %p51 = por %p49, %p50
      %p52 = scmp.ne.s32.totalorder %s43, %s44
      %p53 = scmp.eq.s32.totalorder %s26, 0
      %p54 = por %p52, %p53
      %p55 = scmp.ne.s32.totalorder %s43, %s44
      %p56 = scmp.eq.s32.totalorder %s27, 1
      %p57 = por %p55, %p56
      %p59 = scmp.ne.s32.totalorder %s44, %s58
      %p60 = scmp.eq.s32.totalorder %s27, 0
      %p61 = por %p59, %p60
      %s63 = sadd.s32 %s62, 1
      %p66 = scmp.eq.s32.totalorder %s21, 1
      %p67 = scmp.ne.s32.totalorder %s62, %s64
      %p68 = scmp.eq.s32.totalorder %s21, 0
      %p69 = por %p67, %p68
      %p70 = scmp.ne.s32.totalorder %s62, %s64
      %p71 = scmp.eq.s32.totalorder %s26, 1
      %p72 = por %p70, %p71
      %p73 = scmp.ne.s32.totalorder %s64, %s65
      %p74 = scmp.eq.s32.totalorder %s26, 0
      %p75 = por %p73, %p74
      %p76 = scmp.ne.s32.totalorder %s64, %s65
      %p77 = scmp.eq.s32.totalorder %s27, 1
      %p78 = por %p76, %p77
      %p80 = scmp.ne.s32.totalorder %s65, %s79
      %p81 = scmp.eq.s32.totalorder %s27, 0
      %p82 = por %p80, %p81
      %s83 = ssub.s32 %s28, %s40
      %s84 = ssub.s32 %s29, %s36
      %s85 = sor.u32 %s83, %s84
      %p86 = scmp.eq.s32.totalorder %s85, 0
      %s88 = sadd.s32 %s87, 1
      %s89 = scalar_select %p86, %s87, %s88
      %p92 = pneg %p86
      %p93 = scmp.eq.s32.totalorder %s21, 1
      %p94 = por %p92, %p93
      %p95 = scmp.ne.s32.totalorder %s87, %s90
      %p96 = scmp.eq.s32.totalorder %s21, 0
      %p97 = por %p95, %p96
      %p98 = scmp.ne.s32.totalorder %s87, %s90
      %p99 = scmp.eq.s32.totalorder %s26, 1
      %p100 = por %p98, %p99
      %p101 = scmp.ne.s32.totalorder %s90, %s91
      %p102 = scmp.eq.s32.totalorder %s26, 0
      %p103 = por %p101, %p102
      %p104 = scmp.ne.s32.totalorder %s90, %s91
      %p105 = scmp.eq.s32.totalorder %s27, 1
      %p106 = por %p104, %p105
      %p108 = scmp.ne.s32.totalorder %s91, %s107
      %p109 = scmp.eq.s32.totalorder %s27, 0
      %p110 = por %p108, %p109
      %s111 = ssub.s32 %s28, %s40
      %s112 = ssub.s32 %s29, %s36
      %s113 = sor.u32 %s111, %s112
      %p114 = scmp.eq.s32.totalorder %s113, 0
      %s116 = sadd.s32 %s115, 1
      %s117 = scalar_select %p114, %s115, %s116
      %p120 = pneg %p114
      %p121 = scmp.eq.s32.totalorder %s21, 1
      %p122 = por %p120, %p121
      %p123 = scmp.ne.s32.totalorder %s115, %s118
      %p124 = scmp.eq.s32.totalorder %s21, 0
      %p125 = por %p123, %p124
      %p126 = scmp.ne.s32.totalorder %s115, %s118
      %p127 = scmp.eq.s32.totalorder %s26, 1
      %p128 = por %p126, %p127
      %p129 = scmp.ne.s32.totalorder %s118, %s119
      %p130 = scmp.eq.s32.totalorder %s26, 0
      %p131 = por %p129, %p130
      %p132 = scmp.ne.s32.totalorder %s118, %s119
      %p133 = scmp.eq.s32.totalorder %s27, 1
      %p134 = por %p132, %p133
      %p136 = scmp.ne.s32.totalorder %s119, %s135
      %p137 = scmp.eq.s32.totalorder %s27, 0
      %p138 = por %p136, %p137
      %s139 = ssub.s32 %s28, %s40
      %s140 = ssub.s32 %s29, %s36
      %s141 = sor.u32 %s139, %s140
      %p142 = scmp.eq.s32.totalorder %s141, 0
      %s144 = sadd.s32 %s143, 1
      %s145 = scalar_select %p142, %s143, %s144
      %p148 = pneg %p142
      %p149 = scmp.eq.s32.totalorder %s21, 1
      %p150 = por %p148, %p149
      %p151 = scmp.ne.s32.totalorder %s143, %s146
      %p152 = scmp.eq.s32.totalorder %s21, 0
      %p153 = por %p151, %p152
      %p154 = scmp.ne.s32.totalorder %s143, %s146
      %p155 = scmp.eq.s32.totalorder %s26, 1
      %p156 = por %p154, %p155
      %p157 = scmp.ne.s32.totalorder %s146, %s147
      %p158 = scmp.eq.s32.totalorder %s26, 0
      %p159 = por %p157, %p158
      %p160 = scmp.ne.s32.totalorder %s146, %s147
      %p161 = scmp.eq.s32.totalorder %s27, 1
      %p162 = por %p160, %p161
      %p164 = scmp.ne.s32.totalorder %s147, %s163
      %p165 = scmp.eq.s32.totalorder %s27, 0
      %p166 = por %p164, %p165
      %p167 = scmp.le.s32.totalorder 1, %s21
      %p168 = scmp.lt.s32.totalorder %s21, 3
      %p169 = pnand %p167, %p168
      %p170 = pneg %p169
      // Predicated region
      $region9: #{tpu_custom_call.1} parent=5 // pred_check
        _
      $region10: #{tpu_custom_call.1} parent=5 // pred_check_branch
        %172 = sbr.rel (%p169) target = $region12
      $region11: #{tpu_custom_call.1} parent=5 // pred_region
        %s173 = ssub.s32 %s21, 1
        // Predicated region
        $region13: #{tpu_custom_call.1} parent=11 // pred_check
          %p174 = pneg %p54
        $region14: #{tpu_custom_call.1} parent=11 // pred_check_branch
          %176 = sbr.rel (%p174) target = $region16
        $region15: #{tpu_custom_call.1} parent=11 // pred_region
          %178 = vsyncadd [#allocation5], 0
          %s180 = sshll.u32 %s0, 4
          %s181 = int_to_ptr.hbm [resolvable:$true] %s180
          %183 = dma.hbm_to_smem %s181, 16, [#allocation2], [#allocation5]
        $region16: #{tpu_custom_call.1} parent=11 // pred_fallthru
          _
        // Predicated region
        $region17: #{tpu_custom_call.1} parent=11 // pred_check
          %p184 = pneg %p75
        $region18: #{tpu_custom_call.1} parent=11 // pred_check_branch
          %186 = sbr.rel (%p184) target = $region20
        $region19: #{tpu_custom_call.1} parent=11 // pred_region
          %188 = vsyncadd [#allocation7], 0
          %s190 = sshll.u32 %s1, 4
          %s191 = int_to_ptr.hbm [resolvable:$true] %s190
          %193 = dma.hbm_to_smem %s191, 16, [#allocation6], [#allocation7]
        $region20: #{tpu_custom_call.1} parent=11 // pred_fallthru
          _
      $region12: #{tpu_custom_call.1} parent=5 // pred_fallthru
        _
      %p194 = scmp.lt.s32.totalorder %s21, 2
      // Predicated region
      $region21: #{tpu_custom_call.1} parent=5 // pred_check
        %p195 = pneg %p194
      $region22: #{tpu_custom_call.1} parent=5 // pred_check_branch
        %197 = sbr.rel (%p195) target = $region24
      $region23: #{tpu_custom_call.1} parent=5 // pred_region
        // Predicated region
        $region25: #{tpu_custom_call.1} parent=23 // pred_check
          %p198 = pneg %p97
        $region26: #{tpu_custom_call.1} parent=23 // pred_check_branch
          %200 = sbr.rel (%p198) target = $region28
        $region27: #{tpu_custom_call.1} parent=23 // pred_region
          %s201 = sand.u32 %s87, 1
          %s202 = scalar_lea.sflag [#allocation3], %s201
          %s203 = sand.u32 %s87, 1
          %s204 = smul.addr %s203, 8
          %s205 = scalar_lea.vmem [#allocation8], %s204
          %207 = vsyncadd %s202, 0
          %s208 = sadd.s32 %s29, %s28
          %s209 = smul.addr %s208, 8
          %s210 = scalar_lea.hbm %s2, %s209
          %s212 = sshll.u32 %s210, 4
          %s213 = int_to_ptr.hbm [resolvable:$true] %s212
          %s214 = sshll.u32 %s205, 4
          %s215 = int_to_ptr.vmem [resolvable:$true] %s214
          %217 = dma.hbm_to_vmem [thread:$0]  %s213, 128, %s215, %s202
        $region28: #{tpu_custom_call.1} parent=23 // pred_fallthru
          _
        // Predicated region
        $region29: #{tpu_custom_call.1} parent=23 // pred_check
          %p218 = pneg %p125
        $region30: #{tpu_custom_call.1} parent=23 // pred_check_branch
          %220 = sbr.rel (%p218) target = $region32
        $region31: #{tpu_custom_call.1} parent=23 // pred_region
          %s221 = sand.u32 %s115, 1
          %s222 = scalar_lea.sflag [#allocation10], %s221
          %s223 = sand.u32 %s115, 1
          %s224 = smul.addr %s223, 8
          %s225 = scalar_lea.vmem [#allocation9], %s224
          %227 = vsyncadd %s222, 0
          %s228 = sadd.s32 %s29, %s28
          %s229 = smul.addr %s228, 8
          %s230 = scalar_lea.hbm %s3, %s229
          %s232 = sshll.u32 %s230, 4
          %s233 = int_to_ptr.hbm [resolvable:$true] %s232
          %s234 = sshll.u32 %s225, 4
          %s235 = int_to_ptr.vmem [resolvable:$true] %s234
          %237 = dma.hbm_to_vmem [thread:$0]  %s233, 128, %s235, %s222
        $region32: #{tpu_custom_call.1} parent=23 // pred_fallthru
          _
      $region24: #{tpu_custom_call.1} parent=5 // pred_fallthru
        _
      %p238 = scmp.le.s32.totalorder 1, %s21
      %p239 = scmp.lt.s32.totalorder %s21, 3
      %p240 = pnand %p238, %p239
      %p241 = pneg %p240
      // Predicated region
      $region33: #{tpu_custom_call.1} parent=5 // pred_check
        _
      $region34: #{tpu_custom_call.1} parent=5 // pred_check_branch
        %243 = sbr.rel (%p240) target = $region36
      $region35: #{tpu_custom_call.1} parent=5 // pred_region
        %s244 = ssub.s32 %s21, 1
        // Predicated region
        $region37: #{tpu_custom_call.1} parent=35 // pred_check
          %p245 = pneg %p54
        $region38: #{tpu_custom_call.1} parent=35 // pred_check_branch
          %247 = sbr.rel (%p245) target = $region40
        $region39: #{tpu_custom_call.1} parent=35 // pred_region
          %249 = dma.done [#allocation5], 16
        $region40: #{tpu_custom_call.1} parent=35 // pred_fallthru
          _
        // Predicated region
        $region41: #{tpu_custom_call.1} parent=35 // pred_check
          %p250 = pneg %p75
        $region42: #{tpu_custom_call.1} parent=35 // pred_check_branch
          %252 = sbr.rel (%p250) target = $region44
        $region43: #{tpu_custom_call.1} parent=35 // pred_region
          %254 = dma.done [#allocation7], 16
        $region44: #{tpu_custom_call.1} parent=35 // pred_fallthru
          _
        %s255 = sand.u32 %s90, 1
        %s256 = scalar_lea.sflag [#allocation3], %s255
        %s257 = sand.u32 %s90, 1
        %s258 = smul.addr %s257, 8
        %s259 = scalar_lea.vmem [#allocation8], %s258
        // Predicated region
        $region45: #{tpu_custom_call.1} parent=35 // pred_check
          %p260 = pneg %p103
        $region46: #{tpu_custom_call.1} parent=35 // pred_check_branch
          %262 = sbr.rel (%p260) target = $region48
        $region47: #{tpu_custom_call.1} parent=35 // pred_region
          %264 = dma.done %s256, 128
        $region48: #{tpu_custom_call.1} parent=35 // pred_fallthru
          _
        %s265 = sand.u32 %s118, 1
        %s266 = scalar_lea.sflag [#allocation10], %s265
        %s267 = sand.u32 %s118, 1
        %s268 = smul.addr %s267, 8
        %s269 = scalar_lea.vmem [#allocation9], %s268
        // Predicated region
        $region49: #{tpu_custom_call.1} parent=35 // pred_check
          %p270 = pneg %p131
        $region50: #{tpu_custom_call.1} parent=35 // pred_check_branch
          %272 = sbr.rel (%p270) target = $region52
        $region51: #{tpu_custom_call.1} parent=35 // pred_region
          %274 = dma.done %s266, 128
        $region52: #{tpu_custom_call.1} parent=35 // pred_fallthru
          _
        %275 = sfence
        %p276 = pneg %p54
        %p277 = pneg %p51
        %p278 = pneg %p75
        %p279 = pneg %p72
        %s280 = sand.u32 %s90, 1
        %s281 = scalar_lea.sflag [#allocation3], %s280
        %s282 = sand.u32 %s90, 1
        %s283 = smul.addr %s282, 8
        %s284 = scalar_lea.vmem [#allocation8], %s283
        %p285 = pneg %p103
        %p286 = pneg %p100
        %s287 = sand.u32 %s118, 1
        %s288 = scalar_lea.sflag [#allocation10], %s287
        %s289 = sand.u32 %s118, 1
        %s290 = smul.addr %s289, 8
        %s291 = scalar_lea.vmem [#allocation9], %s290
        %p292 = pneg %p131
        %p293 = pneg %p128
        %p294 = pneg %p159
        %p295 = pneg %p156
        %s296 = sand.u32 %s146, 1
        %s297 = scalar_lea.sflag [#allocation4], %s296
        %s298 = sand.u32 %s146, 1
        %s299 = smul.addr %s298, 8
        %s300 = scalar_lea.vmem [#allocation11], %s299
        %s301 = sld [smem:[#allocation2 + %s30]]
        %s302 = sld [smem:[#allocation6 + %s30]]
        %v303 = vld [vmem:[%s259] sm:$0xff]
        %v304 = vstv %s301
        %v305 = vmul.f32 %v304, %v303
        %v306 = vld [vmem:[%s269] sm:$0xff]
        %v307 = vstv %s302
        %v308 = vmul.f32 %v307, %v306
        %v309 = vadd.f32 %v305, %v308
        %310 = vst [vmem:[%s300] sm:$0xff] %v309
        %s311 = sand.u32 %s146, 1
        %s312 = scalar_lea.sflag [#allocation4], %s311
        %s313 = sand.u32 %s146, 1
        %s314 = smul.addr %s313, 8
        %s315 = scalar_lea.vmem [#allocation11], %s314
        // Predicated region
        $region53: #{tpu_custom_call.1} parent=35 // pred_check
          %p316 = pneg %p156
        $region54: #{tpu_custom_call.1} parent=35 // pred_check_branch
          %318 = sbr.rel (%p316) target = $region56
        $region55: #{tpu_custom_call.1} parent=35 // pred_region
          %320 = vsyncadd %s312, 0
          %s321 = sadd.s32 %s31, %s30
          %s322 = smul.addr %s321, 8
          %s323 = scalar_lea.hbm %s4, %s322
          %s325 = sshll.u32 %s315, 4
          %s326 = int_to_ptr.vmem [resolvable:$true] %s325
          %s327 = sshll.u32 %s323, 4
          %s328 = int_to_ptr.hbm [resolvable:$true] %s327
          %330 = dma.vmem_to_hbm [thread:$0]  %s326, 128, %s328, %s312
        $region56: #{tpu_custom_call.1} parent=35 // pred_fallthru
          _
      $region36: #{tpu_custom_call.1} parent=5 // pred_fallthru
        _
      %p331 = scmp.le.s32.totalorder 2, %s21
      // Predicated region
      $region57: #{tpu_custom_call.1} parent=5 // pred_check
        %p332 = pneg %p331
      $region58: #{tpu_custom_call.1} parent=5 // pred_check_branch
        %334 = sbr.rel (%p332) target = $region60
      $region59: #{tpu_custom_call.1} parent=5 // pred_region
        %s335 = ssub.s32 %s21, 2
        // Predicated region
        $region61: #{tpu_custom_call.1} parent=59 // pred_check
          %p336 = pneg %p162
        $region62: #{tpu_custom_call.1} parent=59 // pred_check_branch
          %338 = sbr.rel (%p336) target = $region64
        $region63: #{tpu_custom_call.1} parent=59 // pred_region
          %s339 = sand.u32 %s147, 1
          %s340 = scalar_lea.sflag [#allocation4], %s339
          %s341 = sand.u32 %s147, 1
          %s342 = smul.addr %s341, 8
          %s343 = scalar_lea.vmem [#allocation11], %s342
          %345 = dma.done %s340, 128
        $region64: #{tpu_custom_call.1} parent=59 // pred_fallthru
          _
      $region60: #{tpu_custom_call.1} parent=5 // pred_fallthru
        _
    $region6: #{tpu_custom_call.1} parent=1 // loop_footer
      %s25 = sadd.s32 1, %s21
    $region7: #{tpu_custom_call.1} parent=1 // loop_footer_branch
      %20 = sbr.rel target = $region3
    $region8: #{tpu_custom_call.1} parent=1 // loop_exit
      _
    %346 = vsyncpa [#allocation3], 1
    %s347 = scalar_lea.sflag [#allocation3], 1
    %348 = vsyncpa %s347, 1
    %349 = vsyncpa [#allocation10], 1
    %s350 = scalar_lea.sflag [#allocation10], 1
    %351 = vsyncpa %s350, 1
    %352 = vsyncpa [#allocation4], 1
    %s353 = scalar_lea.sflag [#allocation4], 1
    %354 = vsyncpa %s353, 1
    %355 = vsyncpa [#allocation5], 1
    %s356 = scalar_lea.sflag [#allocation5], 1
    %357 = vsyncpa %s356, 1
    %358 = vsyncpa [#allocation7], 1

</llo_original>
